<compile_context>
chip_gen: v5e
topology: v5e:2x2
jax: 0.10.0
libtpu: 0.0.40
codegen_flags: <defaults>
</compile_context>

<pallas_src>
import jax
import jax.numpy as jnp
import numpy as np
from jax.experimental import pallas as pl
from jax.experimental.pallas import tpu as pltpu


def _round_up(n, m):
    return pl.cdiv(n, m) * m


def _auto_tile_s(S, D, N, in_bytes, out_bytes, budget=24 << 20):
    """Pick an S tile: double-buffered x+out tiles must fit a v7x-safe budget."""
    def fits(ts):
        return 2 * ts * (D * in_bytes + N * out_bytes) <= budget

    # Prefer large 128-aligned tiles that divide S exactly with >=2 grid steps
    # (keeps both v7x TensorCores busy, amortizes per-step overhead).
    for ts in (1024, 512, 256, 128):
        if fits(ts) and S % ts == 0 and S // ts >= 2:
            return ts
    if S <= 128:
        return int(_round_up(S, 8))
    # Fallback: 128-row tiles (v5e MXU aligned, fits v7x VMEM), pad the tail.
    for ts in (128, 64, 32, 16, 8):
        if fits(ts):
            return ts
    return 8


def prepare_rana_qkv_params(b_weight, b_bias, a_t, *, weight_dtype=None):
    """One-time weight prep: transpose B, zero-pad rank to a 128-lane multiple.

    b_weight : [R, D]  (nn.Linear layout)
    b_bias   : [R]
    a_t      : [R, N]
    returns  : (bwT [D, Rp], bias [1, Rp] f32, a_t_p [Rp, N])
    Padded rank lanes have zero weight and zero bias, so padded bx == 0 and
    contributes exactly 0 to the output regardless of the mask outcome.
    """
    R, D = b_weight.shape
    Rn, N = a_t.shape
    assert Rn == R
    wd = weight_dtype or b_weight.dtype
    Rp = int(_round_up(R, 128))

    bwT = jnp.zeros((D, Rp), wd).at[:, :R].set(b_weight.T.astype(wd))
    bb = jnp.zeros((1, Rp), jnp.float32).at[:, :R].set(b_bias.astype(jnp.float32))
    a_t_p = jnp.zeros((Rp, N), wd).at[:R, :].set(a_t.astype(wd))
    return bwT, bb, a_t_p


def _make_rana_qkv_kernel(thresh):
    thresh = float(thresh)  # compile-time constant, no SMEM operand

    def kernel(x_ref, bwT_ref, bb_ref, at_ref, o_ref):
        # bx = x @ B^T + b : low-rank projection, f32 accumulation on the MXU.
        bx = jnp.dot(x_ref[...], bwT_ref[...],
                     preferred_element_type=jnp.float32) + bb_ref[...]
        # Square-threshold mask in f32 (VPU), then cast to the weight dtype so
        # the dominant [tile_s, Rp] @ [Rp, N] matmul uses the native MXU path.
        bx_masked = jnp.where(bx * bx >= thresh, bx, 0.0).astype(at_ref.dtype)
        o_ref[...] = jnp.dot(bx_masked, at_ref[...],
                             preferred_element_type=jnp.float32).astype(o_ref.dtype)

    return kernel


def rana_qkv(x, params, thresh, *, tile_s=None, interpret=False):
    """
    x      : [1, S, D]   (batch must be 1, mirrors the PyTorch squeeze(0))
    params : output of prepare_rana_qkv_params
    thresh : scalar float (host constant)
    returns: [1, S, N]
    """
    bwT, bb, a_t_p = params
    assert x.shape[0] == 1
    _, S, D = x.shape
    Dw, Rp = bwT.shape
    Rp2, N = a_t_p.shape
    assert Dw == D and Rp2 == Rp

    out_dtype = x.dtype
    x2 = x.reshape(S, D)

    if tile_s is None:
        tile_s = _auto_tile_s(S, D, N,
                              x2.dtype.itemsize, jnp.dtype(out_dtype).itemsize)
    tile_s = int(tile_s)

    # Pad ragged S up to a tile multiple (padded rows sliced off afterwards).
    S_pad = int(_round_up(S, tile_s))
    if S_pad != S:
        x2 = jnp.pad(x2, ((0, S_pad - S), (0, 0)))
    grid = (S_pad // tile_s,)

    # VMEM budget: double-buffered x & out tiles + (conservatively double-
    # buffered) resident weights; explicit limit keeps the pipeline deep on
    # v6e/v5e while staying inside v7x's 64 MiB physical VMEM.
    w_bytes = bwT.dtype.itemsize
    vmem_need = (2 * tile_s * D * x2.dtype.itemsize
                 + 2 * tile_s * N * jnp.dtype(out_dtype).itemsize
                 + 2 * (D * Rp + Rp * N) * w_bytes
                 + 2 * Rp * 4)
    vmem_limit = int(min(max(2 * vmem_need, 16 << 20), 64 << 20))

    out = pl.pallas_call(
        _make_rana_qkv_kernel(thresh),
        out_shape=jax.ShapeDtypeStruct((S_pad, N), out_dtype),
        grid=grid,
        in_specs=[
            pl.BlockSpec((tile_s, D), lambda i: (i, 0)),   # x tile (pipelined)
            pl.BlockSpec((D, Rp), lambda i: (0, 0)),       # B^T   (resident)
            pl.BlockSpec((1, Rp), lambda i: (0, 0)),       # bias  (resident)
            pl.BlockSpec((Rp, N), lambda i: (0, 0)),       # A_t   (resident)
        ],
        out_specs=pl.BlockSpec((tile_s, N), lambda i: (i, 0)),
        compiler_params=pltpu.CompilerParams(
            dimension_semantics=("parallel",),
            vmem_limit_bytes=vmem_limit),
        interpret=interpret,
    )(x2, bwT, bb, a_t_p)

    return out[:S][None, :, :]


def rana_qkv_reference(x, b_weight, b_bias, a_t, thresh):
    """Pure-JAX reference mirroring the PyTorch forward (unpadded weights)."""
    bx = jnp.einsum("bsd,rd->bsr", x, b_weight) + b_bias
    m = (bx * bx) >= thresh
    bx_sq = (bx * m.astype(bx.dtype))[0]
    return (bx_sq @ a_t)[None]


if __name__ == "__main__":
    # Small deterministic problem. S is deliberately not a tile multiple to
    # exercise the ragged-S padding path; N is a multiple of 128 so output
    # stores stay lane-dense.
    S, D_IN, RANK, N_OUT = 300, 64, 16, 384
    THRESH = 0.05

    key = jax.random.PRNGKey(0)
    kx, kw, kb, ka = jax.random.split(key, 4)

    x = jax.random.normal(kx, (1, S, D_IN), dtype=jnp.float32)
    b_weight = (jax.random.normal(kw, (RANK, D_IN), dtype=jnp.float32)
                / jnp.sqrt(D_IN))
    b_bias = 0.01 * jax.random.normal(kb, (RANK,), dtype=jnp.float32)
    a_t = (jax.random.normal(ka, (RANK, N_OUT), dtype=jnp.float32)
           / jnp.sqrt(RANK))

    # One-time weight prep (transpose + rank padding) outside the forward call.
    params = prepare_rana_qkv_params(b_weight, b_bias, a_t)

    out = rana_qkv(x, params, THRESH)
    out = jax.block_until_ready(out)

    ref = rana_qkv_reference(x, b_weight, b_bias, a_t, THRESH)
    np.testing.assert_allclose(np.asarray(out), np.asarray(ref),
                               rtol=1e-5, atol=1e-5)
    assert out.shape == (1, S, N_OUT)

    print("KERNEL_OK")
</pallas_src>

<mosaic_0001>
module attributes {stable_mosaic.version = 11 : i64} {
  func.func @kernel(%arg0: i32, %arg1: memref<128x64xf32, #tpu.memory_space<vmem>>, %arg2: memref<64x128xf32, #tpu.memory_space<vmem>>, %arg3: memref<1x128xf32, #tpu.memory_space<vmem>>, %arg4: memref<128x384xf32, #tpu.memory_space<vmem>>, %arg5: memref<128x384xf32, #tpu.memory_space<vmem>>) attributes {dimension_semantics = [#tpu.dimension_semantics<parallel>], iteration_bounds = array<i64: 3>, scalar_prefetch = 0 : i64, scratch_operands = 0 : i64, tpu.core_type = #tpu.core_type<tc>, window_params = [{transform_indices = @transform_0, window_bounds = array<i64: 128, 64>}, {pipeline_mode = #tpu.pipeline_mode<synchronous>, transform_indices = @transform_1, window_bounds = array<i64: 64, 128>}, {pipeline_mode = #tpu.pipeline_mode<synchronous>, transform_indices = @transform_2, window_bounds = array<i64: 1, 128>}, {pipeline_mode = #tpu.pipeline_mode<synchronous>, transform_indices = @transform_3, window_bounds = array<i64: 128, 384>}, {transform_indices = @transform_4, window_bounds = array<i64: 128, 384>}]} {
    %c0 = arith.constant 0 : index
    %c0_0 = arith.constant 0 : index
    %0 = vector.load %arg1[%c0, %c0_0] : memref<128x64xf32, #tpu.memory_space<vmem>>, vector<128x64xf32>
    %c0_1 = arith.constant 0 : index
    %c0_2 = arith.constant 0 : index
    %1 = vector.load %arg2[%c0_1, %c0_2] : memref<64x128xf32, #tpu.memory_space<vmem>>, vector<64x128xf32>
    %cst = arith.constant dense<0.000000e+00> : vector<128x128xf32>
    %2 = tpu.matmul %0, %1, %cst {dimension_numbers = #tpu.dot_dimension_numbers<[1], [0], [0], [1], [0, 0, 1, 1], [], []>} : vector<128x64xf32>, vector<64x128xf32>, vector<128x128xf32> -> vector<128x128xf32>
    %c0_3 = arith.constant 0 : index
    %c0_4 = arith.constant 0 : index
    %3 = vector.load %arg3[%c0_3, %c0_4] : memref<1x128xf32, #tpu.memory_space<vmem>>, vector<1x128xf32>
    %4 = vector.broadcast %3 : vector<1x128xf32> to vector<128x128xf32>
    %5 = arith.addf %2, %4 : vector<128x128xf32>
    %6 = arith.mulf %5, %5 : vector<128x128xf32>
    %cst_5 = arith.constant 5.000000e-02 : f32
    %7 = vector.broadcast %cst_5 : f32 to vector<128x128xf32>
    %8 = arith.cmpf oge, %6, %7 : vector<128x128xf32>
    %cst_6 = arith.constant 0.000000e+00 : f32
    %9 = vector.broadcast %cst_6 : f32 to vector<128x128xf32>
    %10 = arith.select %8, %5, %9 : vector<128x128xi1>, vector<128x128xf32>
    %c0_7 = arith.constant 0 : index
    %c0_8 = arith.constant 0 : index
    %11 = vector.load %arg4[%c0_7, %c0_8] : memref<128x384xf32, #tpu.memory_space<vmem>>, vector<128x384xf32>
    %cst_9 = arith.constant dense<0.000000e+00> : vector<128x384xf32>
    %12 = tpu.matmul %10, %11, %cst_9 {dimension_numbers = #tpu.dot_dimension_numbers<[1], [0], [0], [1], [0, 0, 1, 1], [], []>} : vector<128x128xf32>, vector<128x384xf32>, vector<128x384xf32> -> vector<128x384xf32>
    %c0_10 = arith.constant 0 : index
    %c0_11 = arith.constant 0 : index
    %13 = vector.load %arg5[%c0_10, %c0_11] : memref<128x384xf32, #tpu.memory_space<vmem>>, vector<128x384xf32>
    tpu.vector_store %arg5[%c0_10, %c0_11], %12 {strides = array<i32>} : memref<128x384xf32, #tpu.memory_space<vmem>>, vector<128x384xf32>,
    return
  }
  func.func @transform_0(%arg0: i32) -> (i32, i32) {
    %c0_i32 = arith.constant 0 : i32
    %c0_i32_0 = arith.constant 0 : i32
    return %arg0, %c0_i32 : i32, i32
  }
  func.func @transform_1(%arg0: i32) -> (i32, i32) {
    %c0_i32 = arith.constant 0 : i32
    %c0_i32_0 = arith.constant 0 : i32
    %c0_i32_1 = arith.constant 0 : i32
    return %c0_i32, %c0_i32_0 : i32, i32
  }
  func.func @transform_2(%arg0: i32) -> (i32, i32) {
    %c0_i32 = arith.constant 0 : i32
    %c0_i32_0 = arith.constant 0 : i32
    %c0_i32_1 = arith.constant 0 : i32
    return %c0_i32, %c0_i32_0 : i32, i32
  }
  func.func @transform_3(%arg0: i32) -> (i32, i32) {
    %c0_i32 = arith.constant 0 : i32
    %c0_i32_0 = arith.constant 0 : i32
    %c0_i32_1 = arith.constant 0 : i32
    return %c0_i32, %c0_i32_0 : i32, i32
  }
  func.func @transform_4(%arg0: i32) -> (i32, i32) {
    %c0_i32 = arith.constant 0 : i32
    %c0_i32_0 = arith.constant 0 : i32
    return %arg0, %c0_i32 : i32, i32
  }
}

</mosaic_0001>

<llo_original>
// kernel: tpu_custom_call.1
$region0: #{tpu_custom_call.1}
  #allocation0 [shape = 'u32[]', space=smem, size = 0x4, offset = 0x4, fixed_abs, tag = 'smem constant byte address 0x4 - core index']
  #allocation1 [shape = 'u32[72,128]{1,0:T(1,128)}', space=vmem, size = 0x9000, scoped, tag = 'internal scratch']
  %s0 = inlined_call_operand.vmem [shape: f32[384,64], index: 0, kind: input, shape index: {}]
  %s1 = inlined_call_operand.vmem [shape: f32[64,128], index: 1, kind: input, shape index: {}]
  %s2 = inlined_call_operand.vmem [shape: f32[1,128], index: 2, kind: input, shape index: {}]
  %s3 = inlined_call_operand.vmem [shape: f32[128,384], index: 3, kind: input, shape index: {}]
  %s4 = inlined_call_operand.hbm [shape: f32[384,384], index: 4, kind: output, shape index: {}]
  %s5 = sld [smem:[#allocation0]]
  $region49: #{tpu_custom_call.1} parent=0
    _
  %s7 = ssub.s32 1, %s5
  %s8 = scalar_select 0, %s7, %s5
  $region1: #{tpu_custom_call.1} parent=0
    #allocation2 [shape = 'u8[393216]{0}', space=vmem, size = 0x60000, scoped, tag = 'output window, operand 0']
    #allocation3 [shape = 's32[2]{0}', space=sflag, size = 0x8, scoped, tag = 'scoped memory for tpu_custom_call.1']
    %9 = vsyncpa [#allocation3], 0
    %s10 = scalar_lea.sflag [#allocation3], 1
    %11 = vsyncpa %s10, 0
    loop: start=0, step=1, limit=5
    $region2: #{tpu_custom_call.1} parent=1 // loop_pre_header
      _
    $region3: #{tpu_custom_call.1} parent=1 // loop_header
      %s13 = sphi 0, %s17
      %p14 = scmp.ge.s32.totalorder %s13, 5
      %s23 = sphi 0, %s25
      %s26 = sphi 0, %s23
      %s27 = sphi 0, %s26
      %s43 = sphi 0, %s27
      %s47 = sphi 0, %s47
      %s49 = sphi 0, %s47
      %s50 = sphi 0, %s49
      %s64 = sphi 0, %s50
      %s68 = sphi 0, %s68
      %s70 = sphi 0, %s68
      %s71 = sphi 0, %s70
      %s85 = sphi 0, %s71
      %s89 = sphi 0, %s89
      %s91 = sphi 0, %s89
      %s92 = sphi 0, %s91
      %s106 = sphi 0, %s92
      %s112 = sphi 0, %s114
      %s115 = sphi 0, %s112
      %s116 = sphi 0, %s115
      %s132 = sphi 0, %s116
    $region4: #{tpu_custom_call.1} parent=1 // loop_header_branch
      %16 = sbr.rel (%p14) target = $region8
    $region5: #{tpu_custom_call.1} parent=1 // loop_body
      %s18 = ssub.s32 %s13, 1
      %s19 = ssub.s32 %s13, 2
      %s20 = sadd.s32 %s13, 1
      %s21 = ssub.s32 %s13, %s20
      %p22 = scmp.eq.s32.totalorder %s21, 0
      %s24 = sadd.s32 %s23, 1
      %s25 = scalar_select %p22, %s23, %s24
      %p28 = pneg %p22
      %p29 = scmp.eq.s32.totalorder %s13, 2
      %p30 = por %p28, %p29
      %p31 = scmp.ne.s32.totalorder %s23, %s26
      %p32 = scmp.eq.s32.totalorder %s13, 0
      %p33 = por %p31, %p32
      %p34 = scmp.ne.s32.totalorder %s23, %s26
      %p35 = scmp.eq.s32.totalorder %s18, 2
      %p36 = por %p34, %p35
      %p37 = scmp.ne.s32.totalorder %s26, %s27
      %p38 = scmp.eq.s32.totalorder %s18, 0
      %p39 = por %p37, %p38
      %p40 = scmp.ne.s32.totalorder %s26, %s27
      %p41 = scmp.eq.s32.totalorder %s19, 2
      %p42 = por %p40, %p41
      %p44 = scmp.ne.s32.totalorder %s27, %s43
      %p45 = scmp.eq.s32.totalorder %s19, 0
      %p46 = por %p44, %p45
      %s48 = sadd.s32 %s47, 1
      %p51 = scmp.eq.s32.totalorder %s13, 2
      %p52 = scmp.ne.s32.totalorder %s47, %s49
      %p53 = scmp.eq.s32.totalorder %s13, 0
      %p54 = por %p52, %p53
      %p55 = scmp.ne.s32.totalorder %s47, %s49
      %p56 = scmp.eq.s32.totalorder %s18, 2
      %p57 = por %p55, %p56
      %p58 = scmp.ne.s32.totalorder %s49, %s50
      %p59 = scmp.eq.s32.totalorder %s18, 0
      %p60 = por %p58, %p59
      %p61 = scmp.ne.s32.totalorder %s49, %s50
      %p62 = scmp.eq.s32.totalorder %s19, 2
      %p63 = por %p61, %p62
      %p65 = scmp.ne.s32.totalorder %s50, %s64
      %p66 = scmp.eq.s32.totalorder %s19, 0
      %p67 = por %p65, %p66
      %s69 = sadd.s32 %s68, 1
      %p72 = scmp.eq.s32.totalorder %s13, 2
      %p73 = scmp.ne.s32.totalorder %s68, %s70
      %p74 = scmp.eq.s32.totalorder %s13, 0
      %p75 = por %p73, %p74
      %p76 = scmp.ne.s32.totalorder %s68, %s70
      %p77 = scmp.eq.s32.totalorder %s18, 2
      %p78 = por %p76, %p77
      %p79 = scmp.ne.s32.totalorder %s70, %s71
      %p80 = scmp.eq.s32.totalorder %s18, 0
      %p81 = por %p79, %p80
      %p82 = scmp.ne.s32.totalorder %s70, %s71
      %p83 = scmp.eq.s32.totalorder %s19, 2
      %p84 = por %p82, %p83
      %p86 = scmp.ne.s32.totalorder %s71, %s85
      %p87 = scmp.eq.s32.totalorder %s19, 0
      %p88 = por %p86, %p87
      %s90 = sadd.s32 %s89, 1
      %p93 = scmp.eq.s32.totalorder %s13, 2
      %p94 = scmp.ne.s32.totalorder %s89, %s91
      %p95 = scmp.eq.s32.totalorder %s13, 0
      %p96 = por %p94, %p95
      %p97 = scmp.ne.s32.totalorder %s89, %s91
      %p98 = scmp.eq.s32.totalorder %s18, 2
      %p99 = por %p97, %p98
      %p100 = scmp.ne.s32.totalorder %s91, %s92
      %p101 = scmp.eq.s32.totalorder %s18, 0
      %p102 = por %p100, %p101
      %p103 = scmp.ne.s32.totalorder %s91, %s92
      %p104 = scmp.eq.s32.totalorder %s19, 2
      %p105 = por %p103, %p104
      %p107 = scmp.ne.s32.totalorder %s92, %s106
      %p108 = scmp.eq.s32.totalorder %s19, 0
      %p109 = por %p107, %p108
      %s110 = ssub.s32 %s13, %s20
      %p111 = scmp.eq.s32.totalorder %s110, 0
      %s113 = sadd.s32 %s112, 1
      %s114 = scalar_select %p111, %s112, %s113
      %p117 = pneg %p111
      %p118 = scmp.eq.s32.totalorder %s13, 2
      %p119 = por %p117, %p118
      %p120 = scmp.ne.s32.totalorder %s112, %s115
      %p121 = scmp.eq.s32.totalorder %s13, 0
      %p122 = por %p120, %p121
      %p123 = scmp.ne.s32.totalorder %s112, %s115
      %p124 = scmp.eq.s32.totalorder %s18, 2
      %p125 = por %p123, %p124
      %p126 = scmp.ne.s32.totalorder %s115, %s116
      %p127 = scmp.eq.s32.totalorder %s18, 0
      %p128 = por %p126, %p127
      %p129 = scmp.ne.s32.totalorder %s115, %s116
      %p130 = scmp.eq.s32.totalorder %s19, 2
      %p131 = por %p129, %p130
      %p133 = scmp.ne.s32.totalorder %s116, %s132
      %p134 = scmp.eq.s32.totalorder %s19, 0
      %p135 = por %p133, %p134
      %p136 = scmp.le.s32.totalorder 1, %s13
      %p137 = scmp.lt.s32.totalorder %s13, 4
      %p138 = pnand %p136, %p137
      %p139 = pneg %p138
      // Predicated region
      $region9: #{tpu_custom_call.1} parent=5 // pred_check
        _
      $region10: #{tpu_custom_call.1} parent=5 // pred_check_branch
        %141 = sbr.rel (%p138) target = $region12
      $region11: #{tpu_custom_call.1} parent=5 // pred_region
        %s142 = ssub.s32 %s13, 1
        // Predicated region
        $region13: #{tpu_custom_call.1} parent=11 // pred_check
          %p143 = pneg %p60
        $region14: #{tpu_custom_call.1} parent=11 // pred_check_branch
          %145 = sbr.rel (%p143) target = $region16
        $region15: #{tpu_custom_call.1} parent=11 // pred_region
          _
        $region16: #{tpu_custom_call.1} parent=11 // pred_fallthru
          _
        // Predicated region
        $region17: #{tpu_custom_call.1} parent=11 // pred_check
          %p146 = pneg %p81
        $region18: #{tpu_custom_call.1} parent=11 // pred_check_branch
          %148 = sbr.rel (%p146) target = $region20
        $region19: #{tpu_custom_call.1} parent=11 // pred_region
          _
        $region20: #{tpu_custom_call.1} parent=11 // pred_fallthru
          _
        // Predicated region
        $region21: #{tpu_custom_call.1} parent=11 // pred_check
          %p149 = pneg %p102
        $region22: #{tpu_custom_call.1} parent=11 // pred_check_branch
          %151 = sbr.rel (%p149) target = $region24
        $region23: #{tpu_custom_call.1} parent=11 // pred_region
          _
        $region24: #{tpu_custom_call.1} parent=11 // pred_fallthru
          _
      $region12: #{tpu_custom_call.1} parent=5 // pred_fallthru
        _
      %p152 = scmp.lt.s32.totalorder %s13, 3
      // Predicated region
      $region25: #{tpu_custom_call.1} parent=5 // pred_check
        %p153 = pneg %p152
      $region26: #{tpu_custom_call.1} parent=5 // pred_check_branch
        %155 = sbr.rel (%p153) target = $region28
      $region27: #{tpu_custom_call.1} parent=5 // pred_region
        // Predicated region
        $region29: #{tpu_custom_call.1} parent=27 // pred_check
          %p156 = pneg %p33
        $region30: #{tpu_custom_call.1} parent=27 // pred_check_branch
          %158 = sbr.rel (%p156) target = $region32
        $region31: #{tpu_custom_call.1} parent=27 // pred_region
          %s159 = smul.u32 16, %s13
          %p160 = scmp.lt.s32.totalorder %s159, 47
          %s161 = scalar_select %p160, %s159, 47
          %s162 = smul.addr %s161, 8
          %s163 = scalar_lea.vmem %s0, %s162
          %s164 = smul.u32 16, %s13
        $region32: #{tpu_custom_call.1} parent=27 // pred_fallthru
          _
      $region28: #{tpu_custom_call.1} parent=5 // pred_fallthru
        _
      %p165 = scmp.le.s32.totalorder 1, %s13
      %p166 = scmp.lt.s32.totalorder %s13, 4
      %p167 = pnand %p165, %p166
      %p168 = pneg %p167
      // Predicated region
      $region33: #{tpu_custom_call.1} parent=5 // pred_check
        _
      $region34: #{tpu_custom_call.1} parent=5 // pred_check_branch
        %170 = sbr.rel (%p167) target = $region36
      $region35: #{tpu_custom_call.1} parent=5 // pred_region
        %s171 = ssub.s32 %s13, 1
        %s172 = smul.u32 16, %s18
        %p173 = scmp.lt.s32.totalorder %s172, 47
        %s174 = scalar_select %p173, %s172, 47
        %s175 = smul.addr %s174, 8
        %s176 = scalar_lea.vmem %s0, %s175
        %p177 = pneg %p39
        %p178 = pneg %p36
        %p179 = pneg %p60
        %p180 = pneg %p57
        %p181 = pneg %p81
        %p182 = pneg %p78
        %p183 = pneg %p102
        %p184 = pneg %p99
        %p185 = pneg %p128
        %p186 = pneg %p125
        %s187 = sand.u32 %s115, 1
        %s188 = scalar_lea.sflag [#allocation3], %s187
        %s189 = sand.u32 %s115, 1
        %s190 = smul.addr %s189, 384
        %s191 = scalar_lea.vmem [#allocation2], %s190
        %s192 = smul.u32 16, %s18
        %p193 = scmp.lt.s32.totalorder %s192, 47
        %s194 = scalar_select %p193, %s192, 47
        %s195 = smul.addr %s194, 8
        %s196 = scalar_lea.vmem %s0, %s195
        %s197 = smul.u32 16, %s18
        %s198 = smul.u32 16, %s18
        %v199 = vld [vmem:[%s196] sm:$0xff]
        %v200 = vld [vmem:[%s196 + $0x8] sm:$0xff]
        %v201 = vld [vmem:[%s196 + $0x10] sm:$0xff]
        %v202 = vld [vmem:[%s196 + $0x18] sm:$0xff]
        %v203 = vld [vmem:[%s196 + $0x20] sm:$0xff]
        %v204 = vld [vmem:[%s196 + $0x28] sm:$0xff]
        %v205 = vld [vmem:[%s196 + $0x30] sm:$0xff]
        %v206 = vld [vmem:[%s196 + $0x38] sm:$0xff]
        %v207 = vld [vmem:[%s196 + $0x40] sm:$0xff]
        %v208 = vld [vmem:[%s196 + $0x48] sm:$0xff]
        %v209 = vld [vmem:[%s196 + $0x50] sm:$0xff]
        %v210 = vld [vmem:[%s196 + $0x58] sm:$0xff]
        %v211 = vld [vmem:[%s196 + $0x60] sm:$0xff]
        %v212 = vld [vmem:[%s196 + $0x68] sm:$0xff]
        %v213 = vld [vmem:[%s196 + $0x70] sm:$0xff]
        %v214 = vld [vmem:[%s196 + $0x78] sm:$0xff]
        %v215 = vld [vmem:[%s1] sm:$0xff]
        %v216 = vld [vmem:[%s1 + $0x8] sm:$0xff]
        %v217 = vld [vmem:[%s1 + $0x10] sm:$0xff]
        %v218 = vld [vmem:[%s1 + $0x18] sm:$0xff]
        %v219 = vld [vmem:[%s1 + $0x20] sm:$0xff]
        %v220 = vld [vmem:[%s1 + $0x28] sm:$0xff]
        %v221 = vld [vmem:[%s1 + $0x30] sm:$0xff]
        %v222 = vld [vmem:[%s1 + $0x38] sm:$0xff]
        %v223 = vld [vmem:[%s2] sm:$0x1]
        %v225 = vperm.slane %v223, 0
        %vm227 = vcmask 523264
        %v229 = vsel %vm227, %v199, 0
        %v232 = vsel %vm227, %v200, 0
        %v235 = vsel %vm227, %v201, 0
        %v238 = vsel %vm227, %v202, 0
        %v241 = vsel %vm227, %v203, 0
        %v244 = vsel %vm227, %v204, 0
        %v247 = vsel %vm227, %v205, 0
        %v250 = vsel %vm227, %v206, 0
        %v253 = vsel %vm227, %v207, 0
        %v256 = vsel %vm227, %v208, 0
        %v259 = vsel %vm227, %v209, 0
        %v262 = vsel %vm227, %v210, 0
        %v265 = vsel %vm227, %v211, 0
        %v268 = vsel %vm227, %v212, 0
        %v271 = vsel %vm227, %v213, 0
        %v274 = vsel %vm227, %v214, 0
        %276 = vmatpush.msra.mxu0 0.0
        %277 = vmatpush.msra.mxu0 0.0
        %278 = vmatpush.msra.mxu0 0.0
        %279 = vmatpush.msra.mxu0 0.0
        %280 = vmatpush.msra.mxu0 0.0
        %281 = vmatpush.msra.mxu0 0.0
        %282 = vmatpush.msra.mxu0 0.0
        %283 = vmatpush.msra.mxu0 0.0
        %284 = vmatpush.msra.mxu0 %v222
        %285 = vmatpush.msra.mxu0 %v221
        %286 = vmatpush.msra.mxu0 %v220
        %287 = vmatpush.msra.mxu0 %v219
        %288 = vmatpush.msra.mxu0 %v218
        %289 = vmatpush.msra.mxu0 %v217
        %290 = vmatpush.msra.mxu0 %v216
        %291 = vmatpush.msra.mxu0 %v215
        %292 = vmatmul.f32.gmra.mxu0 %v229
        %v293 = vpop.f32.mrf.mxu0
        %v294 = vadd.f32 %v225, %v293
        %295 = vmatmul.f32.gmra.mxu0 %v232
        %v296 = vpop.f32.mrf.mxu0
        %v297 = vadd.f32 %v225, %v296
        %298 = vmatmul.f32.gmra.mxu0 %v235
        %v299 = vpop.f32.mrf.mxu0
        %v300 = vadd.f32 %v225, %v299
        %301 = vmatmul.f32.gmra.mxu0 %v238
        %v302 = vpop.f32.mrf.mxu0
        %v303 = vadd.f32 %v225, %v302
        %304 = vmatmul.f32.gmra.mxu0 %v241
        %v305 = vpop.f32.mrf.mxu0
        %v306 = vadd.f32 %v225, %v305
        %307 = vmatmul.f32.gmra.mxu0 %v244
        %v308 = vpop.f32.mrf.mxu0
        %v309 = vadd.f32 %v225, %v308
        %310 = vmatmul.f32.gmra.mxu0 %v247
        %v311 = vpop.f32.mrf.mxu0
        %v312 = vadd.f32 %v225, %v311
        %313 = vmatmul.f32.gmra.mxu0 %v250
        %v314 = vpop.f32.mrf.mxu0
        %v315 = vadd.f32 %v225, %v314
        %316 = vmatmul.f32.gmra.mxu0 %v253
        %v317 = vpop.f32.mrf.mxu0
        %v318 = vadd.f32 %v225, %v317
        %319 = vmatmul.f32.gmra.mxu0 %v256
        %v320 = vpop.f32.mrf.mxu0
        %v321 = vadd.f32 %v225, %v320
        %322 = vmatmul.f32.gmra.mxu0 %v259
        %v323 = vpop.f32.mrf.mxu0
        %v324 = vadd.f32 %v225, %v323
        %325 = vmatmul.f32.gmra.mxu0 %v262
        %v326 = vpop.f32.mrf.mxu0
        %v327 = vadd.f32 %v225, %v326
        %328 = vmatmul.f32.gmra.mxu0 %v265
        %v329 = vpop.f32.mrf.mxu0
        %v330 = vadd.f32 %v225, %v329
        %331 = vmatmul.f32.gmra.mxu0 %v268
        %v332 = vpop.f32.mrf.mxu0
        %v333 = vadd.f32 %v225, %v332
        %334 = vmatmul.f32.gmra.mxu0 %v271
        %v335 = vpop.f32.mrf.mxu0
        %v336 = vadd.f32 %v225, %v335
        %337 = vmatmul.f32.gmra.mxu0 %v274
        %v338 = vpop.f32.mrf.mxu0
        %v339 = vadd.f32 %v225, %v338
        %340 = vdwg.mxu0
        %v341 = vmul.f32 %v294, %v294
        %v342 = vmul.f32 %v297, %v297
        %v343 = vmul.f32 %v300, %v300
        %v344 = vmul.f32 %v303, %v303
        %v345 = vmul.f32 %v306, %v306
        %v346 = vmul.f32 %v309, %v309
        %v347 = vmul.f32 %v312, %v312
        %v348 = vmul.f32 %v315, %v315
        %v349 = vmul.f32 %v318, %v318
        %v350 = vmul.f32 %v321, %v321
        %v351 = vmul.f32 %v324, %v324
        %v352 = vmul.f32 %v327, %v327
        %v353 = vmul.f32 %v330, %v330
        %v354 = vmul.f32 %v333, %v333
        %v355 = vmul.f32 %v336, %v336
        %v356 = vmul.f32 %v339, %v339
        %vm357 = vcmp.ge.f32.partialorder %v341, 0.05
        %vm358 = vcmp.ge.f32.partialorder %v342, 0.05
        %vm359 = vcmp.ge.f32.partialorder %v343, 0.05
        %vm360 = vcmp.ge.f32.partialorder %v344, 0.05
        %vm361 = vcmp.ge.f32.partialorder %v345, 0.05
        %vm362 = vcmp.ge.f32.partialorder %v346, 0.05
        %vm363 = vcmp.ge.f32.partialorder %v347, 0.05
        %vm364 = vcmp.ge.f32.partialorder %v348, 0.05
        %vm365 = vcmp.ge.f32.partialorder %v349, 0.05
        %vm366 = vcmp.ge.f32.partialorder %v350, 0.05
        %vm367 = vcmp.ge.f32.partialorder %v351, 0.05
        %vm368 = vcmp.ge.f32.partialorder %v352, 0.05
        %vm369 = vcmp.ge.f32.partialorder %v353, 0.05
        %vm370 = vcmp.ge.f32.partialorder %v354, 0.05
        %vm371 = vcmp.ge.f32.partialorder %v355, 0.05
        %vm372 = vcmp.ge.f32.partialorder %v356, 0.05
        %v373 = vsel %vm357, %v294, 0.0
        %v374 = vsel %vm358, %v297, 0.0
        %v375 = vsel %vm359, %v300, 0.0
        %v376 = vsel %vm360, %v303, 0.0
        %v377 = vsel %vm361, %v306, 0.0
        %v378 = vsel %vm362, %v309, 0.0
        %v379 = vsel %vm363, %v312, 0.0
        %v380 = vsel %vm364, %v315, 0.0
        %v381 = vsel %vm365, %v318, 0.0
        %v382 = vsel %vm366, %v321, 0.0
        %v383 = vsel %vm367, %v324, 0.0
        %v384 = vsel %vm368, %v327, 0.0
        %v385 = vsel %vm369, %v330, 0.0
        %v386 = vsel %vm370, %v333, 0.0
        %v387 = vsel %vm371, %v336, 0.0
        %v388 = vsel %vm372, %v339, 0.0
        %v389 = vld [vmem:[%s3] sm:$0xff]
        %v390 = vld [vmem:[%s3 + $0x8] sm:$0xff]
        %v391 = vld [vmem:[%s3 + $0x10] sm:$0xff]
        %v392 = vld [vmem:[%s3 + $0x18] sm:$0xff]
        %v393 = vld [vmem:[%s3 + $0x20] sm:$0xff]
        %v394 = vld [vmem:[%s3 + $0x28] sm:$0xff]
        %v395 = vld [vmem:[%s3 + $0x30] sm:$0xff]
        %v396 = vld [vmem:[%s3 + $0x38] sm:$0xff]
        %v397 = vld [vmem:[%s3 + $0x40] sm:$0xff]
        %v398 = vld [vmem:[%s3 + $0x48] sm:$0xff]
        %v399 = vld [vmem:[%s3 + $0x50] sm:$0xff]
        %v400 = vld [vmem:[%s3 + $0x58] sm:$0xff]
        %v401 = vld [vmem:[%s3 + $0x60] sm:$0xff]
        %v402 = vld [vmem:[%s3 + $0x68] sm:$0xff]
        %v403 = vld [vmem:[%s3 + $0x70] sm:$0xff]
        %v404 = vld [vmem:[%s3 + $0x78] sm:$0xff]
        %v405 = vld [vmem:[%s3 + $0x80] sm:$0xff]
        %v406 = vld [vmem:[%s3 + $0x88] sm:$0xff]
        %v407 = vld [vmem:[%s3 + $0x90] sm:$0xff]
        %v408 = vld [vmem:[%s3 + $0x98] sm:$0xff]
        %v409 = vld [vmem:[%s3 + $0xa0] sm:$0xff]
        %v410 = vld [vmem:[%s3 + $0xa8] sm:$0xff]
        %v411 = vld [vmem:[%s3 + $0xb0] sm:$0xff]
        %v412 = vld [vmem:[%s3 + $0xb8] sm:$0xff]
        %v413 = vld [vmem:[%s3 + $0xc0] sm:$0xff]
        %v414 = vld [vmem:[%s3 + $0xc8] sm:$0xff]
        %v415 = vld [vmem:[%s3 + $0xd0] sm:$0xff]
        %v416 = vld [vmem:[%s3 + $0xd8] sm:$0xff]
        %v417 = vld [vmem:[%s3 + $0xe0] sm:$0xff]
        %v418 = vld [vmem:[%s3 + $0xe8] sm:$0xff]
        %v419 = vld [vmem:[%s3 + $0xf0] sm:$0xff]
        %v420 = vld [vmem:[%s3 + $0xf8] sm:$0xff]
        %v421 = vld [vmem:[%s3 + $0x100] sm:$0xff]
        %v422 = vld [vmem:[%s3 + $0x108] sm:$0xff]
        %v423 = vld [vmem:[%s3 + $0x110] sm:$0xff]
        %v424 = vld [vmem:[%s3 + $0x118] sm:$0xff]
        %v425 = vld [vmem:[%s3 + $0x120] sm:$0xff]
        %v426 = vld [vmem:[%s3 + $0x128] sm:$0xff]
        %v427 = vld [vmem:[%s3 + $0x130] sm:$0xff]
        %v428 = vld [vmem:[%s3 + $0x138] sm:$0xff]
        %v429 = vld [vmem:[%s3 + $0x140] sm:$0xff]
        %v430 = vld [vmem:[%s3 + $0x148] sm:$0xff]
        %v431 = vld [vmem:[%s3 + $0x150] sm:$0xff]
        %v432 = vld [vmem:[%s3 + $0x158] sm:$0xff]
        %v433 = vld [vmem:[%s3 + $0x160] sm:$0xff]
        %v434 = vld [vmem:[%s3 + $0x168] sm:$0xff]
        %v435 = vld [vmem:[%s3 + $0x170] sm:$0xff]
        %v436 = vld [vmem:[%s3 + $0x178] sm:$0xff]
        %437 = vmatpush.msra.mxu0 %v434
        %438 = vmatpush.msra.mxu0 %v431
        %439 = vmatpush.msra.mxu0 %v428
        %440 = vmatpush.msra.mxu0 %v425
        %441 = vmatpush.msra.mxu0 %v422
        %442 = vmatpush.msra.mxu0 %v419
        %443 = vmatpush.msra.mxu0 %v416
        %444 = vmatpush.msra.mxu0 %v413
        %445 = vmatpush.msra.mxu0 %v410
        %446 = vmatpush.msra.mxu0 %v407
        %447 = vmatpush.msra.mxu0 %v404
        %448 = vmatpush.msra.mxu0 %v401
        %449 = vmatpush.msra.mxu0 %v398
        %450 = vmatpush.msra.mxu0 %v395
        %451 = vmatpush.msra.mxu0 %v392
        %452 = vmatpush.msra.mxu0 %v389
        %453 = vmatmul.f32.gmra.mxu0 %v373
        %v454 = vpop.f32.mrf.mxu0
        %v455 = vadd.f32 0.0, %v454
        %456 = vmatmul.f32.gmra.mxu0 %v374
        %v457 = vpop.f32.mrf.mxu0
        %v458 = vadd.f32 0.0, %v457
        %459 = vmatmul.f32.gmra.mxu0 %v375
        %v460 = vpop.f32.mrf.mxu0
        %v461 = vadd.f32 0.0, %v460
        %462 = vmatmul.f32.gmra.mxu0 %v376
        %v463 = vpop.f32.mrf.mxu0
        %v464 = vadd.f32 0.0, %v463
        %465 = vmatmul.f32.gmra.mxu0 %v377
        %v466 = vpop.f32.mrf.mxu0
        %v467 = vadd.f32 0.0, %v466
        %468 = vmatmul.f32.gmra.mxu0 %v378
        %v469 = vpop.f32.mrf.mxu0
        %v470 = vadd.f32 0.0, %v469
        %471 = vmatmul.f32.gmra.mxu0 %v379
        %v472 = vpop.f32.mrf.mxu0
        %v473 = vadd.f32 0.0, %v472
        %474 = vmatmul.f32.gmra.mxu0 %v380
        %v475 = vpop.f32.mrf.mxu0
        %v476 = vadd.f32 0.0, %v475
        %477 = vmatmul.f32.gmra.mxu0 %v381
        %v478 = vpop.f32.mrf.mxu0
        %v479 = vadd.f32 0.0, %v478
        %480 = vmatmul.f32.gmra.mxu0 %v382
        %v481 = vpop.f32.mrf.mxu0
        %v482 = vadd.f32 0.0, %v481
        %483 = vmatmul.f32.gmra.mxu0 %v383
        %v484 = vpop.f32.mrf.mxu0
        %v485 = vadd.f32 0.0, %v484
        %486 = vmatmul.f32.gmra.mxu0 %v384
        %v487 = vpop.f32.mrf.mxu0
        %v488 = vadd.f32 0.0, %v487
        %489 = vmatmul.f32.gmra.mxu0 %v385
        %v490 = vpop.f32.mrf.mxu0
        %v491 = vadd.f32 0.0, %v490
        %492 = vmatmul.f32.gmra.mxu0 %v386
        %v493 = vpop.f32.mrf.mxu0
        %v494 = vadd.f32 0.0, %v493
        %495 = vmatmul.f32.gmra.mxu0 %v387
        %v496 = vpop.f32.mrf.mxu0
        %v497 = vadd.f32 0.0, %v496
        %498 = vmatmul.f32.gmra.mxu0 %v388
        %v499 = vpop.f32.mrf.mxu0
        %v500 = vadd.f32 0.0, %v499
        %501 = vdwg.mxu0
        %502 = vmatpush.msra.mxu0 %v435
        %503 = vmatpush.msra.mxu0 %v432
        %504 = vmatpush.msra.mxu0 %v429
        %505 = vmatpush.msra.mxu0 %v426
        %506 = vmatpush.msra.mxu0 %v423
        %507 = vmatpush.msra.mxu0 %v420
        %508 = vmatpush.msra.mxu0 %v417
        %509 = vmatpush.msra.mxu0 %v414
        %510 = vmatpush.msra.mxu0 %v411
        %511 = vmatpush.msra.mxu0 %v408
        %512 = vmatpush.msra.mxu0 %v405
        %513 = vmatpush.msra.mxu0 %v402
        %514 = vmatpush.msra.mxu0 %v399
        %515 = vmatpush.msra.mxu0 %v396
        %516 = vmatpush.msra.mxu0 %v393
        %517 = vmatpush.msra.mxu0 %v390
        %518 = vmatmul.f32.gmra.mxu0 %v373
        %v519 = vpop.f32.mrf.mxu0
        %v520 = vadd.f32 0.0, %v519
        %521 = vmatmul.f32.gmra.mxu0 %v374
        %v522 = vpop.f32.mrf.mxu0
        %v523 = vadd.f32 0.0, %v522
        %524 = vmatmul.f32.gmra.mxu0 %v375
        %v525 = vpop.f32.mrf.mxu0
        %v526 = vadd.f32 0.0, %v525
        %527 = vmatmul.f32.gmra.mxu0 %v376
        %v528 = vpop.f32.mrf.mxu0
        %v529 = vadd.f32 0.0, %v528
        %530 = vmatmul.f32.gmra.mxu0 %v377
        %v531 = vpop.f32.mrf.mxu0
        %v532 = vadd.f32 0.0, %v531
        %533 = vmatmul.f32.gmra.mxu0 %v378
        %v534 = vpop.f32.mrf.mxu0
        %v535 = vadd.f32 0.0, %v534
        %536 = vmatmul.f32.gmra.mxu0 %v379
        %v537 = vpop.f32.mrf.mxu0
        %v538 = vadd.f32 0.0, %v537
        %539 = vmatmul.f32.gmra.mxu0 %v380
        %v540 = vpop.f32.mrf.mxu0
        %v541 = vadd.f32 0.0, %v540
        %542 = vmatmul.f32.gmra.mxu0 %v381
        %v543 = vpop.f32.mrf.mxu0
        %v544 = vadd.f32 0.0, %v543
        %545 = vmatmul.f32.gmra.mxu0 %v382
        %v546 = vpop.f32.mrf.mxu0
        %v547 = vadd.f32 0.0, %v546
        %548 = vmatmul.f32.gmra.mxu0 %v383
        %v549 = vpop.f32.mrf.mxu0
        %v550 = vadd.f32 0.0, %v549
        %551 = vmatmul.f32.gmra.mxu0 %v384
        %v552 = vpop.f32.mrf.mxu0
        %v553 = vadd.f32 0.0, %v552
        %554 = vmatmul.f32.gmra.mxu0 %v385
        %v555 = vpop.f32.mrf.mxu0
        %v556 = vadd.f32 0.0, %v555
        %557 = vmatmul.f32.gmra.mxu0 %v386
        %v558 = vpop.f32.mrf.mxu0
        %v559 = vadd.f32 0.0, %v558
        %560 = vmatmul.f32.gmra.mxu0 %v387
        %v561 = vpop.f32.mrf.mxu0
        %v562 = vadd.f32 0.0, %v561
        %563 = vmatmul.f32.gmra.mxu0 %v388
        %v564 = vpop.f32.mrf.mxu0
        %v565 = vadd.f32 0.0, %v564
        %566 = vdwg.mxu0
        %567 = vmatpush.msra.mxu0 %v436
        %568 = vmatpush.msra.mxu0 %v433
        %569 = vmatpush.msra.mxu0 %v430
        %570 = vmatpush.msra.mxu0 %v427
        %571 = vmatpush.msra.mxu0 %v424
        %572 = vmatpush.msra.mxu0 %v421
        %573 = vmatpush.msra.mxu0 %v418
        %574 = vmatpush.msra.mxu0 %v415
        %575 = vmatpush.msra.mxu0 %v412
        %576 = vmatpush.msra.mxu0 %v409
        %577 = vmatpush.msra.mxu0 %v406
        %578 = vmatpush.msra.mxu0 %v403
        %579 = vmatpush.msra.mxu0 %v400
        %580 = vmatpush.msra.mxu0 %v397
        %581 = vmatpush.msra.mxu0 %v394
        %582 = vmatpush.msra.mxu0 %v391
        %583 = vmatmul.f32.gmra.mxu0 %v373
        %v584 = vpop.f32.mrf.mxu0
        %v585 = vadd.f32 0.0, %v584
        %586 = vmatmul.f32.gmra.mxu0 %v374
        %v587 = vpop.f32.mrf.mxu0
        %v588 = vadd.f32 0.0, %v587
        %589 = vmatmul.f32.gmra.mxu0 %v375
        %v590 = vpop.f32.mrf.mxu0
        %v591 = vadd.f32 0.0, %v590
        %592 = vmatmul.f32.gmra.mxu0 %v376
        %v593 = vpop.f32.mrf.mxu0
        %v594 = vadd.f32 0.0, %v593
        %595 = vmatmul.f32.gmra.mxu0 %v377
        %v596 = vpop.f32.mrf.mxu0
        %v597 = vadd.f32 0.0, %v596
        %598 = vmatmul.f32.gmra.mxu0 %v378
        %v599 = vpop.f32.mrf.mxu0
        %v600 = vadd.f32 0.0, %v599
        %601 = vmatmul.f32.gmra.mxu0 %v379
        %v602 = vpop.f32.mrf.mxu0
        %v603 = vadd.f32 0.0, %v602
        %604 = vmatmul.f32.gmra.mxu0 %v380
        %v605 = vpop.f32.mrf.mxu0
        %v606 = vadd.f32 0.0, %v605
        %607 = vmatmul.f32.gmra.mxu0 %v381
        %v608 = vpop.f32.mrf.mxu0
        %v609 = vadd.f32 0.0, %v608
        %610 = vmatmul.f32.gmra.mxu0 %v382
        %v611 = vpop.f32.mrf.mxu0
        %v612 = vadd.f32 0.0, %v611
        %613 = vmatmul.f32.gmra.mxu0 %v383
        %v614 = vpop.f32.mrf.mxu0
        %v615 = vadd.f32 0.0, %v614
        %616 = vmatmul.f32.gmra.mxu0 %v384
        %v617 = vpop.f32.mrf.mxu0
        %v618 = vadd.f32 0.0, %v617
        %619 = vmatmul.f32.gmra.mxu0 %v385
        %v620 = vpop.f32.mrf.mxu0
        %v621 = vadd.f32 0.0, %v620
        %622 = vmatmul.f32.gmra.mxu0 %v386
        %v623 = vpop.f32.mrf.mxu0
        %v624 = vadd.f32 0.0, %v623
        %625 = vmatmul.f32.gmra.mxu0 %v387
        %v626 = vpop.f32.mrf.mxu0
        %v627 = vadd.f32 0.0, %v626
        %628 = vmatmul.f32.gmra.mxu0 %v388
        %v629 = vpop.f32.mrf.mxu0
        %v630 = vadd.f32 0.0, %v629
        %631 = vdwg.mxu0
        %632 = vst [vmem:[%s191] sm:$0xff] %v455
        %633 = vst [vmem:[%s191 + $0x8] sm:$0xff] %v520
        %634 = vst [vmem:[%s191 + $0x10] sm:$0xff] %v585
        %635 = vst [vmem:[%s191 + $0x18] sm:$0xff] %v458
        %636 = vst [vmem:[%s191 + $0x20] sm:$0xff] %v523
        %637 = vst [vmem:[%s191 + $0x28] sm:$0xff] %v588
        %638 = vst [vmem:[%s191 + $0x30] sm:$0xff] %v461
        %639 = vst [vmem:[%s191 + $0x38] sm:$0xff] %v526
        %640 = vst [vmem:[%s191 + $0x40] sm:$0xff] %v591
        %641 = vst [vmem:[%s191 + $0x48] sm:$0xff] %v464
        %642 = vst [vmem:[%s191 + $0x50] sm:$0xff] %v529
        %643 = vst [vmem:[%s191 + $0x58] sm:$0xff] %v594
        %644 = vst [vmem:[%s191 + $0x60] sm:$0xff] %v467
        %645 = vst [vmem:[%s191 + $0x68] sm:$0xff] %v532
        %646 = vst [vmem:[%s191 + $0x70] sm:$0xff] %v597
        %647 = vst [vmem:[%s191 + $0x78] sm:$0xff] %v470
        %648 = vst [vmem:[%s191 + $0x80] sm:$0xff] %v535
        %649 = vst [vmem:[%s191 + $0x88] sm:$0xff] %v600
        %650 = vst [vmem:[%s191 + $0x90] sm:$0xff] %v473
        %651 = vst [vmem:[%s191 + $0x98] sm:$0xff] %v538
        %652 = vst [vmem:[%s191 + $0xa0] sm:$0xff] %v603
        %653 = vst [vmem:[%s191 + $0xa8] sm:$0xff] %v476
        %654 = vst [vmem:[%s191 + $0xb0] sm:$0xff] %v541
        %655 = vst [vmem:[%s191 + $0xb8] sm:$0xff] %v606
        %656 = vst [vmem:[%s191 + $0xc0] sm:$0xff] %v479
        %657 = vst [vmem:[%s191 + $0xc8] sm:$0xff] %v544
        %658 = vst [vmem:[%s191 + $0xd0] sm:$0xff] %v609
        %659 = vst [vmem:[%s191 + $0xd8] sm:$0xff] %v482
        %660 = vst [vmem:[%s191 + $0xe0] sm:$0xff] %v547
        %661 = vst [vmem:[%s191 + $0xe8] sm:$0xff] %v612
        %662 = vst [vmem:[%s191 + $0xf0] sm:$0xff] %v485
        %663 = vst [vmem:[%s191 + $0xf8] sm:$0xff] %v550
        %664 = vst [vmem:[%s191 + $0x100] sm:$0xff] %v615
        %665 = vst [vmem:[%s191 + $0x108] sm:$0xff] %v488
        %666 = vst [vmem:[%s191 + $0x110] sm:$0xff] %v553
        %667 = vst [vmem:[%s191 + $0x118] sm:$0xff] %v618
        %668 = vst [vmem:[%s191 + $0x120] sm:$0xff] %v491
        %669 = vst [vmem:[%s191 + $0x128] sm:$0xff] %v556
        %670 = vst [vmem:[%s191 + $0x130] sm:$0xff] %v621
        %671 = vst [vmem:[%s191 + $0x138] sm:$0xff] %v494
        %672 = vst [vmem:[%s191 + $0x140] sm:$0xff] %v559
        %673 = vst [vmem:[%s191 + $0x148] sm:$0xff] %v624
        %674 = vst [vmem:[%s191 + $0x150] sm:$0xff] %v497
        %675 = vst [vmem:[%s191 + $0x158] sm:$0xff] %v562
        %676 = vst [vmem:[%s191 + $0x160] sm:$0xff] %v627
        %677 = vst [vmem:[%s191 + $0x168] sm:$0xff] %v500
        %678 = vst [vmem:[%s191 + $0x170] sm:$0xff] %v565
        %679 = vst [vmem:[%s191 + $0x178] sm:$0xff] %v630
        %s680 = sand.u32 %s115, 1
        %s681 = scalar_lea.sflag [#allocation3], %s680
        %s682 = sand.u32 %s115, 1
        %s683 = smul.addr %s682, 384
        %s684 = scalar_lea.vmem [#allocation2], %s683
        // Predicated region
        $region37: #{tpu_custom_call.1} parent=35 // pred_check
          %p685 = pneg %p125
        $region38: #{tpu_custom_call.1} parent=35 // pred_check_branch
          %687 = sbr.rel (%p685) target = $region40
        $region39: #{tpu_custom_call.1} parent=35 // pred_region
          %s688 = smul.u32 16, %s18
          %690 = vsyncadd %s681, 0
          %s691 = smul.addr %s688, 3
          %s692 = smul.addr %s691, 8
          %s693 = scalar_lea.hbm %s4, %s692
          %s694 = sshll.u32 %s684, 4
          %s695 = int_to_ptr.vmem [resolvable:$true] %s694
          %s696 = sshll.u32 %s693, 4
          %s697 = int_to_ptr.hbm [resolvable:$true] %s696
          %702 = dma.vmem_to_hbm [thread:$0]  %s695, 6144, %s697, %s681, 384, 384, 24
        $region40: #{tpu_custom_call.1} parent=35 // pred_fallthru
          _
      $region36: #{tpu_custom_call.1} parent=5 // pred_fallthru
        _
      %p703 = scmp.le.s32.totalorder 2, %s13
      // Predicated region
      $region41: #{tpu_custom_call.1} parent=5 // pred_check
        %p704 = pneg %p703
      $region42: #{tpu_custom_call.1} parent=5 // pred_check_branch
        %706 = sbr.rel (%p704) target = $region44
      $region43: #{tpu_custom_call.1} parent=5 // pred_region
        %s707 = ssub.s32 %s13, 2
        // Predicated region
        $region45: #{tpu_custom_call.1} parent=43 // pred_check
          %p708 = pneg %p131
        $region46: #{tpu_custom_call.1} parent=43 // pred_check_branch
          %710 = sbr.rel (%p708) target = $region48
        $region47: #{tpu_custom_call.1} parent=43 // pred_region
          %s711 = sand.u32 %s116, 1
          %s712 = scalar_lea.sflag [#allocation3], %s711
          %s713 = sand.u32 %s116, 1
          %s714 = smul.addr %s713, 384
          %s715 = scalar_lea.vmem [#allocation2], %s714
          %717 = dma.done %s712, 6144
        $region48: #{tpu_custom_call.1} parent=43 // pred_fallthru
          _
      $region44: #{tpu_custom_call.1} parent=5 // pred_fallthru
        _
    $region6: #{tpu_custom_call.1} parent=1 // loop_footer
      %s17 = sadd.s32 1, %s13
    $region7: #{tpu_custom_call.1} parent=1 // loop_footer_branch
      %12 = sbr.rel target = $region3
    $region8: #{tpu_custom_call.1} parent=1 // loop_exit
      _
    %718 = vsyncpa [#allocation3], 1
    %s719 = scalar_lea.sflag [#allocation3], 1
    %720 = vsyncpa %s719, 1

</llo_original>
